<compile_context>
chip_gen: v7x
topology: tpu7x:2x2x1
jax: 0.10.0
libtpu: 0.0.40
codegen_flags: <defaults>
</compile_context>

<pallas_src>
import numpy as np
import jax
import jax.numpy as jnp
from jax.experimental import pallas as pl
from jax.experimental.pallas import tpu as pltpu

_CONV_K = 192            # 3 cin * 8 * 8 (padded spatial), flattened input width
_POOL_BLK = 384          # 9 pooled pixels * 32 cout = 288, padded to 3*128 lanes
_OUT_PAD = 128           # fc2 output 10 padded to one full lane group


def _conv_as_matmul_indices():
    """Static scatter indices mapping conv weight (cout,cin,kh,kw) into W_big."""
    off, j, co, ci, kh, kw = np.meshgrid(
        np.arange(4), np.arange(9), np.arange(32),
        np.arange(3), np.arange(3), np.arange(3), indexing="ij")
    oh_out = 2 * (j // 3) + off // 2          # conv-output row in the 6x6 grid
    ow_out = 2 * (j % 3) + off % 2            # conv-output col in the 6x6 grid
    rows = ci * 64 + (oh_out + kh) * 8 + (ow_out + kw)   # padded-input flat index
    cols = off * _POOL_BLK + j * 32 + co
    return rows.reshape(-1), cols.reshape(-1)


_W_BIG_ROWS, _W_BIG_COLS = _conv_as_matmul_indices()


def net1_kernel(x_ref, wbig_ref, bc_ref, w1_ref, b1_ref, w2_ref, b2_ref, out_ref):
    """Fused conv3x3(pad1)+ReLU -> maxpool2 -> fc1+ReLU -> fc2."""
    # Single conv matmul covering all 36 output pixels / 4 pool offsets.
    y = jnp.dot(x_ref[...], wbig_ref[...],
                preferred_element_type=jnp.float32)                 # (TB, 1536) f32
    # maxpool2d(., 2) == elementwise max of the four 128-lane-aligned blocks.
    p = jnp.maximum(
        jnp.maximum(y[:, 0 * _POOL_BLK:1 * _POOL_BLK], y[:, 1 * _POOL_BLK:2 * _POOL_BLK]),
        jnp.maximum(y[:, 2 * _POOL_BLK:3 * _POOL_BLK], y[:, 3 * _POOL_BLK:4 * _POOL_BLK]))
    # Conv bias + ReLU hoisted after the max (both monotone in the conv value).
    h = jnp.maximum(p + bc_ref[...], 0.0)                           # (TB, 384)
    # fc1 (+ReLU): padded rows of w1 are zero, so the 96 padding lanes are inert.
    h = jnp.maximum(jnp.dot(h, w1_ref[...],
                            preferred_element_type=jnp.float32) + b1_ref[...], 0.0)
    # fc2: lane-dense (TB, 128) store; real logits live in the first 10 lanes.
    out_ref[...] = (jnp.dot(h, w2_ref[...],
                            preferred_element_type=jnp.float32) + b2_ref[...])


def net1_forward(x, params, *, max_batch_tile=512):
    """x: (N, 3, 6, 6) NCHW float32 (PyTorch layout at the interface)."""
    wc_pt, bc_pt, w1_pt, b1_pt, w2_pt, b2_pt = params
    n = x.shape[0]

    # ---- activation prep: pad -> flatten -> bf16 (3 XLA ops) ----
    n_pad8 = ((n + 7) // 8) * 8                         # keep sublanes aligned
    tb = n_pad8 if n_pad8 <= max_batch_tile else max_batch_tile
    n_pad = ((n_pad8 + tb - 1) // tb) * tb              # multiple of the batch tile
    x_pad = jnp.pad(x, ((0, n_pad - n), (0, 0), (1, 1), (1, 1)))   # (n_pad, 3, 8, 8)
    x_flat = x_pad.reshape(n_pad, _CONV_K).astype(jnp.bfloat16)

    # ---- weight prep (batch-independent, one scatter + a few pads) ----
    vals = jnp.tile(wc_pt.reshape(1, 32 * 27), (36, 1)).reshape(-1)
    w_big = (jnp.zeros((_CONV_K, 4 * _POOL_BLK), jnp.float32)
             .at[_W_BIG_ROWS, _W_BIG_COLS].set(vals)
             .astype(jnp.bfloat16))                                  # (192, 1536)
    bc = jnp.concatenate([jnp.tile(bc_pt.reshape(1, 32), (1, 9)),
                          jnp.zeros((1, _POOL_BLK - 288), jnp.float32)], axis=1)
    # fc1 columns: PyTorch flatten order (cout*9 + j) -> kernel order (j*32 + cout).
    w1 = jnp.transpose(w1_pt.reshape(128, 32, 9), (2, 1, 0)).reshape(288, 128)
    w1 = jnp.pad(w1, ((0, _POOL_BLK - 288), (0, 0)))                 # (384, 128)
    b1 = b1_pt.reshape(1, 128)
    w2 = jnp.pad(w2_pt.T, ((0, 0), (0, _OUT_PAD - 10)))              # (128, 128)
    b2 = jnp.pad(b2_pt.reshape(1, 10), ((0, 0), (0, _OUT_PAD - 10)))

    out = pl.pallas_call(
        net1_kernel,
        out_shape=jax.ShapeDtypeStruct((n_pad, _OUT_PAD), jnp.float32),
        grid=(n_pad // tb,),
        in_specs=[
            pl.BlockSpec((tb, _CONV_K), lambda i: (i, 0)),           # activations
            pl.BlockSpec((_CONV_K, 4 * _POOL_BLK), lambda i: (0, 0)),  # W_big (resident)
            pl.BlockSpec((1, _POOL_BLK), lambda i: (0, 0)),
            pl.BlockSpec((_POOL_BLK, 128), lambda i: (0, 0)),
            pl.BlockSpec((1, 128), lambda i: (0, 0)),
            pl.BlockSpec((128, _OUT_PAD), lambda i: (0, 0)),
            pl.BlockSpec((1, _OUT_PAD), lambda i: (0, 0)),
        ],
        out_specs=pl.BlockSpec((tb, _OUT_PAD), lambda i: (i, 0)),
        compiler_params=pltpu.CompilerParams(dimension_semantics=("parallel",)),
    )(x_flat, w_big, bc, w1, b1, w2, b2)
    return out[:n, :10]


def net1_reference(x, params):
    """Pure-JAX NCHW reference with exact PyTorch Net1 semantics."""
    wc, bc, w1, b1, w2, b2 = params
    y = jax.lax.conv_general_dilated(
        x, wc, window_strides=(1, 1), padding=((1, 1), (1, 1)),
        dimension_numbers=("NCHW", "OIHW", "NCHW"))
    y = jnp.maximum(y + bc[None, :, None, None], 0.0)
    y = jax.lax.reduce_window(y, -jnp.inf, jax.lax.max,
                              (1, 1, 2, 2), (1, 1, 2, 2), "VALID")
    flat = y.reshape(x.shape[0], -1)                     # (N, 288), (c,h,w) order
    h = jnp.maximum(flat @ w1.T + b1, 0.0)
    return h @ w2.T + b2


if __name__ == "__main__":
    key = jax.random.PRNGKey(0)
    ks = jax.random.split(key, 7)
    params = (
        jax.random.normal(ks[0], (32, 3, 3, 3), jnp.float32) * 0.10,   # conv1.weight (OIHW)
        jax.random.normal(ks[1], (32,), jnp.float32) * 0.10,           # conv1.bias
        jax.random.normal(ks[2], (128, 288), jnp.float32) * 0.05,      # fc1.weight
        jax.random.normal(ks[3], (128,), jnp.float32) * 0.05,          # fc1.bias
        jax.random.normal(ks[4], (10, 128), jnp.float32) * 0.05,       # fc2.weight
        jax.random.normal(ks[5], (10,), jnp.float32) * 0.05,           # fc2.bias
    )
    x = jax.random.normal(ks[6], (8, 3, 6, 6), jnp.float32)            # N=8 batch

    out = jax.block_until_ready(net1_forward(x, params))
    ref = jax.block_until_ready(net1_reference(x, params))

    assert out.shape == (8, 10) and out.dtype == jnp.float32
    np.testing.assert_allclose(np.asarray(out), np.asarray(ref), rtol=2e-2, atol=2e-2)
    print("KERNEL_OK")
</pallas_src>

<mosaic_0001>
module attributes {stable_mosaic.version = 11 : i64} {
  func.func @net1_kernel(%arg0: i32, %arg1: memref<8x192xbf16, #tpu.memory_space<vmem>>, %arg2: memref<192x1536xbf16, #tpu.memory_space<vmem>>, %arg3: memref<1x384xf32, #tpu.memory_space<vmem>>, %arg4: memref<384x128xf32, #tpu.memory_space<vmem>>, %arg5: memref<1x128xf32, #tpu.memory_space<vmem>>, %arg6: memref<128x128xf32, #tpu.memory_space<vmem>>, %arg7: memref<1x128xf32, #tpu.memory_space<vmem>>, %arg8: memref<8x128xf32, #tpu.memory_space<vmem>>) attributes {dimension_semantics = [#tpu.dimension_semantics<parallel>], iteration_bounds = array<i64: 1>, scalar_prefetch = 0 : i64, scratch_operands = 0 : i64, tpu.core_type = #tpu.core_type<tc>, window_params = [{transform_indices = @transform_0, window_bounds = array<i64: 8, 192>}, {pipeline_mode = #tpu.pipeline_mode<synchronous>, transform_indices = @transform_1, window_bounds = array<i64: 192, 1536>}, {pipeline_mode = #tpu.pipeline_mode<synchronous>, transform_indices = @transform_2, window_bounds = array<i64: 1, 384>}, {pipeline_mode = #tpu.pipeline_mode<synchronous>, transform_indices = @transform_3, window_bounds = array<i64: 384, 128>}, {pipeline_mode = #tpu.pipeline_mode<synchronous>, transform_indices = @transform_4, window_bounds = array<i64: 1, 128>}, {pipeline_mode = #tpu.pipeline_mode<synchronous>, transform_indices = @transform_5, window_bounds = array<i64: 128, 128>}, {pipeline_mode = #tpu.pipeline_mode<synchronous>, transform_indices = @transform_6, window_bounds = array<i64: 1, 128>}, {transform_indices = @transform_7, window_bounds = array<i64: 8, 128>}]} {
    %c0 = arith.constant 0 : index
    %c0_0 = arith.constant 0 : index
    %0 = vector.load %arg1[%c0, %c0_0] : memref<8x192xbf16, #tpu.memory_space<vmem>>, vector<8x192xbf16>
    %c0_1 = arith.constant 0 : index
    %c0_2 = arith.constant 0 : index
    %1 = vector.load %arg2[%c0_1, %c0_2] : memref<192x1536xbf16, #tpu.memory_space<vmem>>, vector<192x1536xbf16>
    %cst = arith.constant dense<0.000000e+00> : vector<8x1536xf32>
    %2 = tpu.matmul %0, %1, %cst {dimension_numbers = #tpu.dot_dimension_numbers<[1], [0], [0], [1], [0, 0, 1, 1], [], []>} : vector<8x192xbf16>, vector<192x1536xbf16>, vector<8x1536xf32> -> vector<8x1536xf32>
    %3 = vector.extract_strided_slice %2 {offsets = [0, 0], sizes = [8, 384], strides = [1, 1]} : vector<8x1536xf32> to vector<8x384xf32>
    %4 = vector.extract_strided_slice %2 {offsets = [0, 384], sizes = [8, 384], strides = [1, 1]} : vector<8x1536xf32> to vector<8x384xf32>
    %5 = arith.maximumf %3, %4 : vector<8x384xf32>
    %6 = vector.extract_strided_slice %2 {offsets = [0, 768], sizes = [8, 384], strides = [1, 1]} : vector<8x1536xf32> to vector<8x384xf32>
    %7 = vector.extract_strided_slice %2 {offsets = [0, 1152], sizes = [8, 384], strides = [1, 1]} : vector<8x1536xf32> to vector<8x384xf32>
    %8 = arith.maximumf %6, %7 : vector<8x384xf32>
    %9 = arith.maximumf %5, %8 : vector<8x384xf32>
    %c0_3 = arith.constant 0 : index
    %c0_4 = arith.constant 0 : index
    %10 = vector.load %arg3[%c0_3, %c0_4] : memref<1x384xf32, #tpu.memory_space<vmem>>, vector<1x384xf32>
    %11 = vector.broadcast %10 : vector<1x384xf32> to vector<8x384xf32>
    %12 = arith.addf %9, %11 : vector<8x384xf32>
    %cst_5 = arith.constant 0.000000e+00 : f32
    %13 = vector.broadcast %cst_5 : f32 to vector<8x384xf32>
    %14 = arith.maximumf %12, %13 : vector<8x384xf32>
    %c0_6 = arith.constant 0 : index
    %c0_7 = arith.constant 0 : index
    %15 = vector.load %arg4[%c0_6, %c0_7] : memref<384x128xf32, #tpu.memory_space<vmem>>, vector<384x128xf32>
    %cst_8 = arith.constant dense<0.000000e+00> : vector<8x128xf32>
    %16 = tpu.matmul %14, %15, %cst_8 {dimension_numbers = #tpu.dot_dimension_numbers<[1], [0], [0], [1], [0, 0, 1, 1], [], []>} : vector<8x384xf32>, vector<384x128xf32>, vector<8x128xf32> -> vector<8x128xf32>
    %c0_9 = arith.constant 0 : index
    %c0_10 = arith.constant 0 : index
    %17 = vector.load %arg5[%c0_9, %c0_10] : memref<1x128xf32, #tpu.memory_space<vmem>>, vector<1x128xf32>
    %18 = vector.broadcast %17 : vector<1x128xf32> to vector<8x128xf32>
    %19 = arith.addf %16, %18 : vector<8x128xf32>
    %cst_11 = arith.constant 0.000000e+00 : f32
    %20 = vector.broadcast %cst_11 : f32 to vector<8x128xf32>
    %21 = arith.maximumf %19, %20 : vector<8x128xf32>
    %c0_12 = arith.constant 0 : index
    %c0_13 = arith.constant 0 : index
    %22 = vector.load %arg6[%c0_12, %c0_13] : memref<128x128xf32, #tpu.memory_space<vmem>>, vector<128x128xf32>
    %cst_14 = arith.constant dense<0.000000e+00> : vector<8x128xf32>
    %23 = tpu.matmul %21, %22, %cst_14 {dimension_numbers = #tpu.dot_dimension_numbers<[1], [0], [0], [1], [0, 0, 1, 1], [], []>} : vector<8x128xf32>, vector<128x128xf32>, vector<8x128xf32> -> vector<8x128xf32>
    %c0_15 = arith.constant 0 : index
    %c0_16 = arith.constant 0 : index
    %24 = vector.load %arg7[%c0_15, %c0_16] : memref<1x128xf32, #tpu.memory_space<vmem>>, vector<1x128xf32>
    %25 = vector.broadcast %24 : vector<1x128xf32> to vector<8x128xf32>
    %26 = arith.addf %23, %25 : vector<8x128xf32>
    %c0_17 = arith.constant 0 : index
    %c0_18 = arith.constant 0 : index
    %27 = vector.load %arg8[%c0_17, %c0_18] : memref<8x128xf32, #tpu.memory_space<vmem>>, vector<8x128xf32>
    tpu.vector_store %arg8[%c0_17, %c0_18], %26 {strides = array<i32>} : memref<8x128xf32, #tpu.memory_space<vmem>>, vector<8x128xf32>,
    return
  }
  func.func @transform_0(%arg0: i32) -> (i32, i32) {
    %c0_i32 = arith.constant 0 : i32
    %c0_i32_0 = arith.constant 0 : i32
    return %arg0, %c0_i32 : i32, i32
  }
  func.func @transform_1(%arg0: i32) -> (i32, i32) {
    %c0_i32 = arith.constant 0 : i32
    %c0_i32_0 = arith.constant 0 : i32
    %c0_i32_1 = arith.constant 0 : i32
    return %c0_i32, %c0_i32_0 : i32, i32
  }
  func.func @transform_2(%arg0: i32) -> (i32, i32) {
    %c0_i32 = arith.constant 0 : i32
    %c0_i32_0 = arith.constant 0 : i32
    %c0_i32_1 = arith.constant 0 : i32
    return %c0_i32, %c0_i32_0 : i32, i32
  }
  func.func @transform_3(%arg0: i32) -> (i32, i32) {
    %c0_i32 = arith.constant 0 : i32
    %c0_i32_0 = arith.constant 0 : i32
    %c0_i32_1 = arith.constant 0 : i32
    return %c0_i32, %c0_i32_0 : i32, i32
  }
  func.func @transform_4(%arg0: i32) -> (i32, i32) {
    %c0_i32 = arith.constant 0 : i32
    %c0_i32_0 = arith.constant 0 : i32
    %c0_i32_1 = arith.constant 0 : i32
    return %c0_i32, %c0_i32_0 : i32, i32
  }
  func.func @transform_5(%arg0: i32) -> (i32, i32) {
    %c0_i32 = arith.constant 0 : i32
    %c0_i32_0 = arith.constant 0 : i32
    %c0_i32_1 = arith.constant 0 : i32
    return %c0_i32, %c0_i32_0 : i32, i32
  }
  func.func @transform_6(%arg0: i32) -> (i32, i32) {
    %c0_i32 = arith.constant 0 : i32
    %c0_i32_0 = arith.constant 0 : i32
    %c0_i32_1 = arith.constant 0 : i32
    return %c0_i32, %c0_i32_0 : i32, i32
  }
  func.func @transform_7(%arg0: i32) -> (i32, i32) {
    %c0_i32 = arith.constant 0 : i32
    %c0_i32_0 = arith.constant 0 : i32
    return %arg0, %c0_i32 : i32, i32
  }
}

</mosaic_0001>

<llo_original>
// kernel: tpu_custom_call.1
$region0: #{tpu_custom_call.1}
  #allocation0 [shape = 'u32[]', space=smem, size = 0x4, offset = 0x4, fixed_abs, tag = 'smem constant byte address 0x4 - core index']
  #allocation1 [shape = 'u32[144,128]{1,0:T(1,128)}', space=vmem, size = 0x12000, scoped, tag = 'internal scratch']
  %s0 = inlined_call_operand.hbm [shape: bf16[8,192], index: 0, kind: input, shape index: {}]
  %s1 = inlined_call_operand.hbm [shape: bf16[192,1536], index: 1, kind: input, shape index: {}]
  %s2 = inlined_call_operand.vmem [shape: f32[1,384], index: 2, kind: input, shape index: {}]
  %s3 = inlined_call_operand.hbm [shape: f32[384,128], index: 3, kind: input, shape index: {}]
  %s4 = inlined_call_operand.vmem [shape: f32[1,128], index: 4, kind: input, shape index: {}]
  %s5 = inlined_call_operand.hbm [shape: f32[128,128], index: 5, kind: input, shape index: {}]
  %s6 = inlined_call_operand.vmem [shape: f32[1,128], index: 6, kind: input, shape index: {}]
  %s7 = inlined_call_operand.hbm [shape: f32[8,128], index: 7, kind: output, shape index: {}]
  %s8 = sld [smem:[#allocation0]]
  $region54: #{tpu_custom_call.1} parent=0
    _
  %s10 = ssub.s32 1, %s8
  %s11 = scalar_select 0, %s10, %s8
  $region1: #{tpu_custom_call.1} parent=0
    #allocation2 [shape = 'u8[4096]{0}', space=vmem, size = 0x1000, scoped, tag = 'input window, operand 0, single buffered']
    #allocation3 [shape = 's32[1]{0}', space=sflag, size = 0x4, scoped, tag = 'scoped memory for tpu_custom_call.1']
    #allocation4 [shape = 's32[1]{0}', space=sflag, size = 0x4, scoped, tag = 'scoped memory for tpu_custom_call.1']
    #allocation5 [shape = 'u8[589824]{0}', space=vmem, size = 0x90000, scoped, tag = 'input window, operand 1, single buffered']
    #allocation6 [shape = 's32[1]{0}', space=sflag, size = 0x4, scoped, tag = 'scoped memory for tpu_custom_call.1']
    #allocation7 [shape = 'u8[196608]{0}', space=vmem, size = 0x30000, scoped, tag = 'input window, operand 3, single buffered']
    #allocation8 [shape = 'u8[65536]{0}', space=vmem, size = 0x10000, scoped, tag = 'input window, operand 5, single buffered']
    #allocation9 [shape = 's32[1]{0}', space=sflag, size = 0x4, scoped, tag = 'scoped memory for tpu_custom_call.1']
    #allocation10 [shape = 'u8[4096]{0}', space=vmem, size = 0x1000, scoped, tag = 'output window, operand 0, single buffered']
    %12 = vsyncpa [#allocation3], 0
    %13 = vsyncpa [#allocation6], 0
    %14 = vsyncpa [#allocation9], 0
    %15 = vsyncpa [#allocation4], 0
    // Predicated region
    $region2: #{tpu_custom_call.1} parent=1 // pred_check
      _
    $region3: #{tpu_custom_call.1} parent=1 // pred_check_branch
      %17 = sbr.rel (0) target = $region5
    $region4: #{tpu_custom_call.1} parent=1 // pred_region
      %s19 = ssub.s32 128, 128
      %20 = vsyncadd [#allocation3], %s19
      %s22 = sshll.u32 [#allocation2], 4
      %s23 = int_to_ptr.vmem [resolvable:$true] %s22
      %25 = dma.hbm_to_vmem [thread:$0]  %s0, 128, %s23, [#allocation3]
    $region5: #{tpu_custom_call.1} parent=1 // pred_fallthru
      _
    // Predicated region
    $region6: #{tpu_custom_call.1} parent=1 // pred_check
      _
    $region7: #{tpu_custom_call.1} parent=1 // pred_check_branch
      %27 = sbr.rel (0) target = $region9
    $region8: #{tpu_custom_call.1} parent=1 // pred_region
      %s29 = ssub.s32 18432, 18432
      %30 = vsyncadd [#allocation6], %s29
      %s31 = sshll.u32 [#allocation5], 4
      %s32 = int_to_ptr.vmem [resolvable:$true] %s31
      %37 = dma.hbm_to_vmem [thread:$0]  %s1, 18432, %s32, [#allocation6], 768, 768, 48
    $region9: #{tpu_custom_call.1} parent=1 // pred_fallthru
      _
    // Predicated region
    $region10: #{tpu_custom_call.1} parent=1 // pred_check
      _
    $region11: #{tpu_custom_call.1} parent=1 // pred_check_branch
      %39 = sbr.rel (0) target = $region13
    $region12: #{tpu_custom_call.1} parent=1 // pred_region
      _
    $region13: #{tpu_custom_call.1} parent=1 // pred_fallthru
      _
    // Predicated region
    $region14: #{tpu_custom_call.1} parent=1 // pred_check
      _
    $region15: #{tpu_custom_call.1} parent=1 // pred_check_branch
      %41 = sbr.rel (0) target = $region17
    $region16: #{tpu_custom_call.1} parent=1 // pred_region
      %s43 = ssub.s32 6144, 6144
      %44 = vsyncadd [#allocation6], %s43
      %s45 = sshll.u32 [#allocation7], 4
      %s46 = int_to_ptr.vmem [resolvable:$true] %s45
      %51 = dma.hbm_to_vmem [thread:$0]  %s3, 6144, %s46, [#allocation6], 128, 128, 8
    $region17: #{tpu_custom_call.1} parent=1 // pred_fallthru
      _
    // Predicated region
    $region18: #{tpu_custom_call.1} parent=1 // pred_check
      _
    $region19: #{tpu_custom_call.1} parent=1 // pred_check_branch
      %53 = sbr.rel (0) target = $region21
    $region20: #{tpu_custom_call.1} parent=1 // pred_region
      _
    $region21: #{tpu_custom_call.1} parent=1 // pred_fallthru
      _
    // Predicated region
    $region22: #{tpu_custom_call.1} parent=1 // pred_check
      _
    $region23: #{tpu_custom_call.1} parent=1 // pred_check_branch
      %55 = sbr.rel (0) target = $region25
    $region24: #{tpu_custom_call.1} parent=1 // pred_region
      %s57 = ssub.s32 2048, 2048
      %58 = vsyncadd [#allocation9], %s57
      %s59 = sshll.u32 [#allocation8], 4
      %s60 = int_to_ptr.vmem [resolvable:$true] %s59
      %65 = dma.hbm_to_vmem [thread:$0]  %s5, 2048, %s60, [#allocation9], 128, 128, 8
    $region25: #{tpu_custom_call.1} parent=1 // pred_fallthru
      _
    // Predicated region
    $region26: #{tpu_custom_call.1} parent=1 // pred_check
      _
    $region27: #{tpu_custom_call.1} parent=1 // pred_check_branch
      %67 = sbr.rel (0) target = $region29
    $region28: #{tpu_custom_call.1} parent=1 // pred_region
      _
    $region29: #{tpu_custom_call.1} parent=1 // pred_fallthru
      _
    // Predicated region
    $region30: #{tpu_custom_call.1} parent=1 // pred_check
      _
    $region31: #{tpu_custom_call.1} parent=1 // pred_check_branch
      %69 = sbr.rel (0) target = $region33
    $region32: #{tpu_custom_call.1} parent=1 // pred_region
      %70 = dma.done [#allocation3], 128
    $region33: #{tpu_custom_call.1} parent=1 // pred_fallthru
      _
    // Predicated region
    $region34: #{tpu_custom_call.1} parent=1 // pred_check
      _
    $region35: #{tpu_custom_call.1} parent=1 // pred_check_branch
      %72 = sbr.rel (0) target = $region37
    $region36: #{tpu_custom_call.1} parent=1 // pred_region
      %73 = dma.done [#allocation6], 18432
    $region37: #{tpu_custom_call.1} parent=1 // pred_fallthru
      _
    // Predicated region
    $region38: #{tpu_custom_call.1} parent=1 // pred_check
      _
    $region39: #{tpu_custom_call.1} parent=1 // pred_check_branch
      %75 = sbr.rel (0) target = $region41
    $region40: #{tpu_custom_call.1} parent=1 // pred_region
      %76 = dma.done [#allocation6], 6144
    $region41: #{tpu_custom_call.1} parent=1 // pred_fallthru
      _
    // Predicated region
    $region42: #{tpu_custom_call.1} parent=1 // pred_check
      _
    $region43: #{tpu_custom_call.1} parent=1 // pred_check_branch
      %78 = sbr.rel (0) target = $region45
    $region44: #{tpu_custom_call.1} parent=1 // pred_region
      %79 = dma.done [#allocation9], 2048
    $region45: #{tpu_custom_call.1} parent=1 // pred_fallthru
      _
    %v81 = vld [vmem:[#allocation2] sm:$0xff]
    %v82 = vld [vmem:[#allocation5] sm:$0xff]
    %v83 = vld [vmem:[#allocation5 + $0x8] sm:$0xff]
    %v84 = vld [vmem:[#allocation5 + $0x10] sm:$0xff]
    %v85 = vld [vmem:[#allocation5 + $0x18] sm:$0xff]
    %v86 = vld [vmem:[#allocation5 + $0x20] sm:$0xff]
    %v87 = vld [vmem:[#allocation5 + $0x28] sm:$0xff]
    %v88 = vld [vmem:[#allocation5 + $0x30] sm:$0xff]
    %v89 = vld [vmem:[#allocation5 + $0x38] sm:$0xff]
    %v90 = vld [vmem:[#allocation5 + $0x40] sm:$0xff]
    %v91 = vld [vmem:[#allocation5 + $0x48] sm:$0xff]
    %v92 = vld [vmem:[#allocation5 + $0x50] sm:$0xff]
    %v93 = vld [vmem:[#allocation5 + $0x58] sm:$0xff]
    %v94 = vld [vmem:[#allocation5 + $0x60] sm:$0xff]
    %v95 = vld [vmem:[#allocation5 + $0x68] sm:$0xff]
    %v96 = vld [vmem:[#allocation5 + $0x70] sm:$0xff]
    %v97 = vld [vmem:[#allocation5 + $0x78] sm:$0xff]
    %v98 = vld [vmem:[#allocation5 + $0x80] sm:$0xff]
    %v99 = vld [vmem:[#allocation5 + $0x88] sm:$0xff]
    %v100 = vld [vmem:[#allocation5 + $0x90] sm:$0xff]
    %v101 = vld [vmem:[#allocation5 + $0x98] sm:$0xff]
    %v102 = vld [vmem:[#allocation5 + $0xa0] sm:$0xff]
    %v103 = vld [vmem:[#allocation5 + $0xa8] sm:$0xff]
    %v104 = vld [vmem:[#allocation5 + $0xb0] sm:$0xff]
    %v105 = vld [vmem:[#allocation5 + $0xb8] sm:$0xff]
    %v106 = vld [vmem:[#allocation5 + $0xc0] sm:$0xff]
    %v107 = vld [vmem:[#allocation5 + $0xc8] sm:$0xff]
    %v108 = vld [vmem:[#allocation5 + $0xd0] sm:$0xff]
    %v109 = vld [vmem:[#allocation5 + $0xd8] sm:$0xff]
    %v110 = vld [vmem:[#allocation5 + $0xe0] sm:$0xff]
    %v111 = vld [vmem:[#allocation5 + $0xe8] sm:$0xff]
    %v112 = vld [vmem:[#allocation5 + $0xf0] sm:$0xff]
    %v113 = vld [vmem:[#allocation5 + $0xf8] sm:$0xff]
    %v114 = vld [vmem:[#allocation5 + $0x100] sm:$0xff]
    %v115 = vld [vmem:[#allocation5 + $0x108] sm:$0xff]
    %v116 = vld [vmem:[#allocation5 + $0x110] sm:$0xff]
    %v117 = vld [vmem:[#allocation5 + $0x118] sm:$0xff]
    %v118 = vld [vmem:[#allocation5 + $0x120] sm:$0xff]
    %v119 = vld [vmem:[#allocation5 + $0x128] sm:$0xff]
    %v120 = vld [vmem:[#allocation5 + $0x130] sm:$0xff]
    %v121 = vld [vmem:[#allocation5 + $0x138] sm:$0xff]
    %v122 = vld [vmem:[#allocation5 + $0x140] sm:$0xff]
    %v123 = vld [vmem:[#allocation5 + $0x148] sm:$0xff]
    %v124 = vld [vmem:[#allocation5 + $0x150] sm:$0xff]
    %v125 = vld [vmem:[#allocation5 + $0x158] sm:$0xff]
    %v126 = vld [vmem:[#allocation5 + $0x160] sm:$0xff]
    %v127 = vld [vmem:[#allocation5 + $0x168] sm:$0xff]
    %v128 = vld [vmem:[#allocation5 + $0x170] sm:$0xff]
    %v129 = vld [vmem:[#allocation5 + $0x178] sm:$0xff]
    %v130 = vld [vmem:[#allocation5 + $0x180] sm:$0xff]
    %v131 = vld [vmem:[#allocation5 + $0x188] sm:$0xff]
    %v132 = vld [vmem:[#allocation5 + $0x190] sm:$0xff]
    %v133 = vld [vmem:[#allocation5 + $0x198] sm:$0xff]
    %v134 = vld [vmem:[#allocation5 + $0x1a0] sm:$0xff]
    %v135 = vld [vmem:[#allocation5 + $0x1a8] sm:$0xff]
    %v136 = vld [vmem:[#allocation5 + $0x1b0] sm:$0xff]
    %v137 = vld [vmem:[#allocation5 + $0x1b8] sm:$0xff]
    %v138 = vld [vmem:[#allocation5 + $0x1c0] sm:$0xff]
    %v139 = vld [vmem:[#allocation5 + $0x1c8] sm:$0xff]
    %v140 = vld [vmem:[#allocation5 + $0x1d0] sm:$0xff]
    %v141 = vld [vmem:[#allocation5 + $0x1d8] sm:$0xff]
    %v142 = vld [vmem:[#allocation5 + $0x1e0] sm:$0xff]
    %v143 = vld [vmem:[#allocation5 + $0x1e8] sm:$0xff]
    %v144 = vld [vmem:[#allocation5 + $0x1f0] sm:$0xff]
    %v145 = vld [vmem:[#allocation5 + $0x1f8] sm:$0xff]
    %v146 = vld [vmem:[#allocation5 + $0x200] sm:$0xff]
    %v147 = vld [vmem:[#allocation5 + $0x208] sm:$0xff]
    %v148 = vld [vmem:[#allocation5 + $0x210] sm:$0xff]
    %v149 = vld [vmem:[#allocation5 + $0x218] sm:$0xff]
    %v150 = vld [vmem:[#allocation5 + $0x220] sm:$0xff]
    %v151 = vld [vmem:[#allocation5 + $0x228] sm:$0xff]
    %v152 = vld [vmem:[#allocation5 + $0x230] sm:$0xff]
    %v153 = vld [vmem:[#allocation5 + $0x238] sm:$0xff]
    %v154 = vld [vmem:[#allocation5 + $0x240] sm:$0xff]
    %v155 = vld [vmem:[#allocation5 + $0x248] sm:$0xff]
    %v156 = vld [vmem:[#allocation5 + $0x250] sm:$0xff]
    %v157 = vld [vmem:[#allocation5 + $0x258] sm:$0xff]
    %v158 = vld [vmem:[#allocation5 + $0x260] sm:$0xff]
    %v159 = vld [vmem:[#allocation5 + $0x268] sm:$0xff]
    %v160 = vld [vmem:[#allocation5 + $0x270] sm:$0xff]
    %v161 = vld [vmem:[#allocation5 + $0x278] sm:$0xff]
    %v162 = vld [vmem:[#allocation5 + $0x280] sm:$0xff]
    %v163 = vld [vmem:[#allocation5 + $0x288] sm:$0xff]
    %v164 = vld [vmem:[#allocation5 + $0x290] sm:$0xff]
    %v165 = vld [vmem:[#allocation5 + $0x298] sm:$0xff]
    %v166 = vld [vmem:[#allocation5 + $0x2a0] sm:$0xff]
    %v167 = vld [vmem:[#allocation5 + $0x2a8] sm:$0xff]
    %v168 = vld [vmem:[#allocation5 + $0x2b0] sm:$0xff]
    %v169 = vld [vmem:[#allocation5 + $0x2b8] sm:$0xff]
    %v170 = vld [vmem:[#allocation5 + $0x2c0] sm:$0xff]
    %v171 = vld [vmem:[#allocation5 + $0x2c8] sm:$0xff]
    %v172 = vld [vmem:[#allocation5 + $0x2d0] sm:$0xff]
    %v173 = vld [vmem:[#allocation5 + $0x2d8] sm:$0xff]
    %v174 = vld [vmem:[#allocation5 + $0x2e0] sm:$0xff]
    %v175 = vld [vmem:[#allocation5 + $0x2e8] sm:$0xff]
    %v176 = vld [vmem:[#allocation5 + $0x2f0] sm:$0xff]
    %v177 = vld [vmem:[#allocation5 + $0x2f8] sm:$0xff]
    %v178 = vld [vmem:[#allocation5 + $0x300] sm:$0xff]
    %v179 = vld [vmem:[#allocation5 + $0x308] sm:$0xff]
    %v180 = vld [vmem:[#allocation5 + $0x310] sm:$0xff]
    %v181 = vld [vmem:[#allocation5 + $0x318] sm:$0xff]
    %v182 = vld [vmem:[#allocation5 + $0x320] sm:$0xff]
    %v183 = vld [vmem:[#allocation5 + $0x328] sm:$0xff]
    %v184 = vld [vmem:[#allocation5 + $0x330] sm:$0xff]
    %v185 = vld [vmem:[#allocation5 + $0x338] sm:$0xff]
    %v186 = vld [vmem:[#allocation5 + $0x340] sm:$0xff]
    %v187 = vld [vmem:[#allocation5 + $0x348] sm:$0xff]
    %v188 = vld [vmem:[#allocation5 + $0x350] sm:$0xff]
    %v189 = vld [vmem:[#allocation5 + $0x358] sm:$0xff]
    %v190 = vld [vmem:[#allocation5 + $0x360] sm:$0xff]
    %v191 = vld [vmem:[#allocation5 + $0x368] sm:$0xff]
    %v192 = vld [vmem:[#allocation5 + $0x370] sm:$0xff]
    %v193 = vld [vmem:[#allocation5 + $0x378] sm:$0xff]
    %v194 = vld [vmem:[#allocation5 + $0x380] sm:$0xff]
    %v195 = vld [vmem:[#allocation5 + $0x388] sm:$0xff]
    %v196 = vld [vmem:[#allocation5 + $0x390] sm:$0xff]
    %v197 = vld [vmem:[#allocation5 + $0x398] sm:$0xff]
    %v198 = vld [vmem:[#allocation5 + $0x3a0] sm:$0xff]
    %v199 = vld [vmem:[#allocation5 + $0x3a8] sm:$0xff]
    %v200 = vld [vmem:[#allocation5 + $0x3b0] sm:$0xff]
    %v201 = vld [vmem:[#allocation5 + $0x3b8] sm:$0xff]
    %v202 = vld [vmem:[#allocation5 + $0x3c0] sm:$0xff]
    %v203 = vld [vmem:[#allocation5 + $0x3c8] sm:$0xff]
    %v204 = vld [vmem:[#allocation5 + $0x3d0] sm:$0xff]
    %v205 = vld [vmem:[#allocation5 + $0x3d8] sm:$0xff]
    %v206 = vld [vmem:[#allocation5 + $0x3e0] sm:$0xff]
    %v207 = vld [vmem:[#allocation5 + $0x3e8] sm:$0xff]
    %v208 = vld [vmem:[#allocation5 + $0x3f0] sm:$0xff]
    %v209 = vld [vmem:[#allocation5 + $0x3f8] sm:$0xff]
    %v210 = vld [vmem:[#allocation5 + $0x400] sm:$0xff]
    %v211 = vld [vmem:[#allocation5 + $0x408] sm:$0xff]
    %v212 = vld [vmem:[#allocation5 + $0x410] sm:$0xff]
    %v213 = vld [vmem:[#allocation5 + $0x418] sm:$0xff]
    %v214 = vld [vmem:[#allocation5 + $0x420] sm:$0xff]
    %v215 = vld [vmem:[#allocation5 + $0x428] sm:$0xff]
    %v216 = vld [vmem:[#allocation5 + $0x430] sm:$0xff]
    %v217 = vld [vmem:[#allocation5 + $0x438] sm:$0xff]
    %v218 = vld [vmem:[#allocation5 + $0x440] sm:$0xff]
    %v219 = vld [vmem:[#allocation5 + $0x448] sm:$0xff]
    %v220 = vld [vmem:[#allocation5 + $0x450] sm:$0xff]
    %v221 = vld [vmem:[#allocation5 + $0x458] sm:$0xff]
    %v222 = vld [vmem:[#allocation5 + $0x460] sm:$0xff]
    %v223 = vld [vmem:[#allocation5 + $0x468] sm:$0xff]
    %v224 = vld [vmem:[#allocation5 + $0x470] sm:$0xff]
    %v225 = vld [vmem:[#allocation5 + $0x478] sm:$0xff]
    %v227 = vunpack.c.l.b16 %v81
    %v228 = vunpack.c.h.b16 %v81
    %v229 = vpack.c.b16 %v227, %v227
    %v230 = vpack.c.b16 %v228, %v228
    %v376 = vunpack.c.l.b16 %v82
    %v377 = vunpack.c.h.b16 %v82
    %v378 = vunpack.c.l.b16 %v83
    %v379 = vunpack.c.h.b16 %v83
    %v380 = vunpack.c.l.b16 %v84
    %v381 = vunpack.c.h.b16 %v84
    %v382 = vunpack.c.l.b16 %v85
    %v383 = vunpack.c.h.b16 %v85
    %v384 = vunpack.c.l.b16 %v86
    %v385 = vunpack.c.h.b16 %v86
    %v386 = vunpack.c.l.b16 %v87
    %v387 = vunpack.c.h.b16 %v87
    %v388 = vunpack.c.l.b16 %v88
    %v389 = vunpack.c.h.b16 %v88
    %v390 = vunpack.c.l.b16 %v89
    %v391 = vunpack.c.h.b16 %v89
    %v392 = vunpack.c.l.b16 %v90
    %v393 = vunpack.c.h.b16 %v90
    %v394 = vunpack.c.l.b16 %v91
    %v395 = vunpack.c.h.b16 %v91
    %v396 = vunpack.c.l.b16 %v92
    %v397 = vunpack.c.h.b16 %v92
    %v398 = vunpack.c.l.b16 %v93
    %v399 = vunpack.c.h.b16 %v93
    %v400 = vunpack.c.l.b16 %v94
    %v401 = vunpack.c.h.b16 %v94
    %v402 = vunpack.c.l.b16 %v95
    %v403 = vunpack.c.h.b16 %v95
    %v404 = vunpack.c.l.b16 %v96
    %v405 = vunpack.c.h.b16 %v96
    %v406 = vunpack.c.l.b16 %v97
    %v407 = vunpack.c.h.b16 %v97
    %v408 = vunpack.c.l.b16 %v98
    %v409 = vunpack.c.h.b16 %v98
    %v410 = vunpack.c.l.b16 %v99
    %v411 = vunpack.c.h.b16 %v99
    %v412 = vunpack.c.l.b16 %v100
    %v413 = vunpack.c.h.b16 %v100
    %v414 = vunpack.c.l.b16 %v101
    %v415 = vunpack.c.h.b16 %v101
    %v416 = vunpack.c.l.b16 %v102
    %v417 = vunpack.c.h.b16 %v102
    %v418 = vunpack.c.l.b16 %v103
    %v419 = vunpack.c.h.b16 %v103
    %v420 = vunpack.c.l.b16 %v104
    %v421 = vunpack.c.h.b16 %v104
    %v422 = vunpack.c.l.b16 %v105
    %v423 = vunpack.c.h.b16 %v105
    %v424 = vunpack.c.l.b16 %v106
    %v425 = vunpack.c.h.b16 %v106
    %v426 = vunpack.c.l.b16 %v107
    %v427 = vunpack.c.h.b16 %v107
    %v428 = vunpack.c.l.b16 %v108
    %v429 = vunpack.c.h.b16 %v108
    %v430 = vunpack.c.l.b16 %v109
    %v431 = vunpack.c.h.b16 %v109
    %v432 = vunpack.c.l.b16 %v110
    %v433 = vunpack.c.h.b16 %v110
    %v434 = vunpack.c.l.b16 %v111
    %v435 = vunpack.c.h.b16 %v111
    %v436 = vunpack.c.l.b16 %v112
    %v437 = vunpack.c.h.b16 %v112
    %v438 = vunpack.c.l.b16 %v113
    %v439 = vunpack.c.h.b16 %v113
    %v440 = vunpack.c.l.b16 %v114
    %v441 = vunpack.c.h.b16 %v114
    %v442 = vunpack.c.l.b16 %v115
    %v443 = vunpack.c.h.b16 %v115
    %v444 = vunpack.c.l.b16 %v116
    %v445 = vunpack.c.h.b16 %v116
    %v446 = vunpack.c.l.b16 %v117
    %v447 = vunpack.c.h.b16 %v117
    %v448 = vunpack.c.l.b16 %v118
    %v449 = vunpack.c.h.b16 %v118
    %v450 = vunpack.c.l.b16 %v119
    %v451 = vunpack.c.h.b16 %v119
    %v452 = vunpack.c.l.b16 %v120
    %v453 = vunpack.c.h.b16 %v120
    %v454 = vunpack.c.l.b16 %v121
    %v455 = vunpack.c.h.b16 %v121
    %v456 = vunpack.c.l.b16 %v122
    %v457 = vunpack.c.h.b16 %v122
    %v458 = vunpack.c.l.b16 %v123
    %v459 = vunpack.c.h.b16 %v123
    %v460 = vunpack.c.l.b16 %v124
    %v461 = vunpack.c.h.b16 %v124
    %v462 = vunpack.c.l.b16 %v125
    %v463 = vunpack.c.h.b16 %v125
    %v464 = vunpack.c.l.b16 %v126
    %v465 = vunpack.c.h.b16 %v126
    %v466 = vunpack.c.l.b16 %v127
    %v467 = vunpack.c.h.b16 %v127
    %v468 = vunpack.c.l.b16 %v128
    %v469 = vunpack.c.h.b16 %v128
    %v470 = vunpack.c.l.b16 %v129
    %v471 = vunpack.c.h.b16 %v129
    %v472 = vunpack.c.l.b16 %v130
    %v473 = vunpack.c.h.b16 %v130
    %v474 = vunpack.c.l.b16 %v131
    %v475 = vunpack.c.h.b16 %v131
    %v476 = vunpack.c.l.b16 %v132
    %v477 = vunpack.c.h.b16 %v132
    %v478 = vunpack.c.l.b16 %v133
    %v479 = vunpack.c.h.b16 %v133
    %v480 = vunpack.c.l.b16 %v134
    %v481 = vunpack.c.h.b16 %v134
    %v482 = vunpack.c.l.b16 %v135
    %v483 = vunpack.c.h.b16 %v135
    %v484 = vunpack.c.l.b16 %v136
    %v485 = vunpack.c.h.b16 %v136
    %v486 = vunpack.c.l.b16 %v137
    %v487 = vunpack.c.h.b16 %v137
    %v488 = vunpack.c.l.b16 %v138
    %v489 = vunpack.c.h.b16 %v138
    %v490 = vunpack.c.l.b16 %v139
    %v491 = vunpack.c.h.b16 %v139
    %v492 = vunpack.c.l.b16 %v140
    %v493 = vunpack.c.h.b16 %v140
    %v494 = vunpack.c.l.b16 %v141
    %v495 = vunpack.c.h.b16 %v141
    %v496 = vunpack.c.l.b16 %v142
    %v497 = vunpack.c.h.b16 %v142
    %v498 = vunpack.c.l.b16 %v143
    %v499 = vunpack.c.h.b16 %v143
    %v500 = vunpack.c.l.b16 %v144
    %v501 = vunpack.c.h.b16 %v144
    %v502 = vunpack.c.l.b16 %v145
    %v503 = vunpack.c.h.b16 %v145
    %v504 = vunpack.c.l.b16 %v146
    %v505 = vunpack.c.h.b16 %v146
    %v506 = vunpack.c.l.b16 %v147
    %v507 = vunpack.c.h.b16 %v147
    %v508 = vunpack.c.l.b16 %v148
    %v509 = vunpack.c.h.b16 %v148
    %v510 = vunpack.c.l.b16 %v149
    %v511 = vunpack.c.h.b16 %v149
    %v512 = vunpack.c.l.b16 %v150
    %v513 = vunpack.c.h.b16 %v150
    %v514 = vunpack.c.l.b16 %v151
    %v515 = vunpack.c.h.b16 %v151
    %v516 = vunpack.c.l.b16 %v152
    %v517 = vunpack.c.h.b16 %v152
    %v518 = vunpack.c.l.b16 %v153
    %v519 = vunpack.c.h.b16 %v153
    %v520 = vunpack.c.l.b16 %v154
    %v521 = vunpack.c.h.b16 %v154
    %v522 = vunpack.c.l.b16 %v155
    %v523 = vunpack.c.h.b16 %v155
    %v524 = vunpack.c.l.b16 %v156
    %v525 = vunpack.c.h.b16 %v156
    %v526 = vunpack.c.l.b16 %v157
    %v527 = vunpack.c.h.b16 %v157
    %v528 = vunpack.c.l.b16 %v158
    %v529 = vunpack.c.h.b16 %v158
    %v530 = vunpack.c.l.b16 %v159
    %v531 = vunpack.c.h.b16 %v159
    %v532 = vunpack.c.l.b16 %v160
    %v533 = vunpack.c.h.b16 %v160
    %v534 = vunpack.c.l.b16 %v161
    %v535 = vunpack.c.h.b16 %v161
    %v536 = vunpack.c.l.b16 %v162
    %v537 = vunpack.c.h.b16 %v162
    %v538 = vunpack.c.l.b16 %v163
    %v539 = vunpack.c.h.b16 %v163
    %v540 = vunpack.c.l.b16 %v164
    %v541 = vunpack.c.h.b16 %v164
    %v542 = vunpack.c.l.b16 %v165
    %v543 = vunpack.c.h.b16 %v165
    %v544 = vunpack.c.l.b16 %v166
    %v545 = vunpack.c.h.b16 %v166
    %v546 = vunpack.c.l.b16 %v167
    %v547 = vunpack.c.h.b16 %v167
    %v548 = vunpack.c.l.b16 %v168
    %v549 = vunpack.c.h.b16 %v168
    %v550 = vunpack.c.l.b16 %v169
    %v551 = vunpack.c.h.b16 %v169
    %v552 = vunpack.c.l.b16 %v170
    %v553 = vunpack.c.h.b16 %v170
    %v554 = vunpack.c.l.b16 %v171
    %v555 = vunpack.c.h.b16 %v171
    %v556 = vunpack.c.l.b16 %v172
    %v557 = vunpack.c.h.b16 %v172
    %v558 = vunpack.c.l.b16 %v173
    %v559 = vunpack.c.h.b16 %v173
    %v560 = vunpack.c.l.b16 %v174
    %v561 = vunpack.c.h.b16 %v174
    %v562 = vunpack.c.l.b16 %v175
    %v563 = vunpack.c.h.b16 %v175
    %v564 = vunpack.c.l.b16 %v176
    %v565 = vunpack.c.h.b16 %v176
    %v566 = vunpack.c.l.b16 %v177
    %v567 = vunpack.c.h.b16 %v177
    %v568 = vunpack.c.l.b16 %v178
    %v569 = vunpack.c.h.b16 %v178
    %v570 = vunpack.c.l.b16 %v179
    %v571 = vunpack.c.h.b16 %v179
    %v572 = vunpack.c.l.b16 %v180
    %v573 = vunpack.c.h.b16 %v180
    %v574 = vunpack.c.l.b16 %v181
    %v575 = vunpack.c.h.b16 %v181
    %v576 = vunpack.c.l.b16 %v182
    %v577 = vunpack.c.h.b16 %v182
    %v578 = vunpack.c.l.b16 %v183
    %v579 = vunpack.c.h.b16 %v183
    %v580 = vunpack.c.l.b16 %v184
    %v581 = vunpack.c.h.b16 %v184
    %v582 = vunpack.c.l.b16 %v185
    %v583 = vunpack.c.h.b16 %v185
    %v584 = vunpack.c.l.b16 %v186
    %v585 = vunpack.c.h.b16 %v186
    %v586 = vunpack.c.l.b16 %v187
    %v587 = vunpack.c.h.b16 %v187
    %v588 = vunpack.c.l.b16 %v188
    %v589 = vunpack.c.h.b16 %v188
    %v590 = vunpack.c.l.b16 %v189
    %v591 = vunpack.c.h.b16 %v189
    %v592 = vunpack.c.l.b16 %v190
    %v593 = vunpack.c.h.b16 %v190
    %v594 = vunpack.c.l.b16 %v191
    %v595 = vunpack.c.h.b16 %v191
    %v596 = vunpack.c.l.b16 %v192
    %v597 = vunpack.c.h.b16 %v192
    %v598 = vunpack.c.l.b16 %v193
    %v599 = vunpack.c.h.b16 %v193
    %v600 = vunpack.c.l.b16 %v194
    %v601 = vunpack.c.h.b16 %v194
    %v602 = vunpack.c.l.b16 %v195
    %v603 = vunpack.c.h.b16 %v195
    %v604 = vunpack.c.l.b16 %v196
    %v605 = vunpack.c.h.b16 %v196
    %v606 = vunpack.c.l.b16 %v197
    %v607 = vunpack.c.h.b16 %v197
    %v608 = vunpack.c.l.b16 %v198
    %v609 = vunpack.c.h.b16 %v198
    %v610 = vunpack.c.l.b16 %v199
    %v611 = vunpack.c.h.b16 %v199
    %v612 = vunpack.c.l.b16 %v200
    %v613 = vunpack.c.h.b16 %v200
    %v614 = vunpack.c.l.b16 %v201
    %v615 = vunpack.c.h.b16 %v201
    %v616 = vunpack.c.l.b16 %v202
    %v617 = vunpack.c.h.b16 %v202
    %v618 = vunpack.c.l.b16 %v203
    %v619 = vunpack.c.h.b16 %v203
    %v620 = vunpack.c.l.b16 %v204
    %v621 = vunpack.c.h.b16 %v204
    %v622 = vunpack.c.l.b16 %v205
    %v623 = vunpack.c.h.b16 %v205
    %v624 = vunpack.c.l.b16 %v206
    %v625 = vunpack.c.h.b16 %v206
    %v626 = vunpack.c.l.b16 %v207
    %v627 = vunpack.c.h.b16 %v207
    %v628 = vunpack.c.l.b16 %v208
    %v629 = vunpack.c.h.b16 %v208
    %v630 = vunpack.c.l.b16 %v209
    %v631 = vunpack.c.h.b16 %v209
    %v632 = vunpack.c.l.b16 %v210
    %v633 = vunpack.c.h.b16 %v210
    %v634 = vunpack.c.l.b16 %v211
    %v635 = vunpack.c.h.b16 %v211
    %v636 = vunpack.c.l.b16 %v212
    %v637 = vunpack.c.h.b16 %v212
    %v638 = vunpack.c.l.b16 %v213
    %v639 = vunpack.c.h.b16 %v213
    %v640 = vunpack.c.l.b16 %v214
    %v641 = vunpack.c.h.b16 %v214
    %v642 = vunpack.c.l.b16 %v215
    %v643 = vunpack.c.h.b16 %v215
    %v644 = vunpack.c.l.b16 %v216
    %v645 = vunpack.c.h.b16 %v216
    %v646 = vunpack.c.l.b16 %v217
    %v647 = vunpack.c.h.b16 %v217
    %v648 = vunpack.c.l.b16 %v218
    %v649 = vunpack.c.h.b16 %v218
    %v650 = vunpack.c.l.b16 %v219
    %v651 = vunpack.c.h.b16 %v219
    %v652 = vunpack.c.l.b16 %v220
    %v653 = vunpack.c.h.b16 %v220
    %v654 = vunpack.c.l.b16 %v221
    %v655 = vunpack.c.h.b16 %v221
    %v656 = vunpack.c.l.b16 %v222
    %v657 = vunpack.c.h.b16 %v222
    %v658 = vunpack.c.l.b16 %v223
    %v659 = vunpack.c.h.b16 %v223
    %v660 = vunpack.c.l.b16 %v224
    %v661 = vunpack.c.h.b16 %v224
    %v662 = vunpack.c.l.b16 %v225
    %v663 = vunpack.c.h.b16 %v225
    %v664 = vpack.c.b16 %v388, %v376
    %v665 = vpack.c.b16 %v389, %v377
    %v666 = vpack.c.b16 %v390, %v378
    %v667 = vpack.c.b16 %v391, %v379
    %v668 = vpack.c.b16 %v392, %v380
    %v669 = vpack.c.b16 %v393, %v381
    %v670 = vpack.c.b16 %v394, %v382
    %v671 = vpack.c.b16 %v395, %v383
    %v672 = vpack.c.b16 %v396, %v384
    %v673 = vpack.c.b16 %v397, %v385
    %v674 = vpack.c.b16 %v398, %v386
    %v675 = vpack.c.b16 %v399, %v387
    %v676 = vpack.c.b16 %v412, %v400
    %v677 = vpack.c.b16 %v413, %v401
    %v678 = vpack.c.b16 %v414, %v402
    %v679 = vpack.c.b16 %v415, %v403
    %v680 = vpack.c.b16 %v416, %v404
    %v681 = vpack.c.b16 %v417, %v405
    %v682 = vpack.c.b16 %v418, %v406
    %v683 = vpack.c.b16 %v419, %v407
    %v684 = vpack.c.b16 %v420, %v408
    %v685 = vpack.c.b16 %v421, %v409
    %v686 = vpack.c.b16 %v422, %v410
    %v687 = vpack.c.b16 %v423, %v411
    %v688 = vpack.c.b16 %v436, %v424
    %v689 = vpack.c.b16 %v437, %v425
    %v690 = vpack.c.b16 %v438, %v426
    %v691 = vpack.c.b16 %v439, %v427
    %v692 = vpack.c.b16 %v440, %v428
    %v693 = vpack.c.b16 %v441, %v429
    %v694 = vpack.c.b16 %v442, %v430
    %v695 = vpack.c.b16 %v443, %v431
    %v696 = vpack.c.b16 %v444, %v432
    %v697 = vpack.c.b16 %v445, %v433
    %v698 = vpack.c.b16 %v446, %v434
    %v699 = vpack.c.b16 %v447, %v435
    %v700 = vpack.c.b16 %v460, %v448
    %v701 = vpack.c.b16 %v461, %v449
    %v702 = vpack.c.b16 %v462, %v450
    %v703 = vpack.c.b16 %v463, %v451
    %v704 = vpack.c.b16 %v464, %v452
    %v705 = vpack.c.b16 %v465, %v453
    %v706 = vpack.c.b16 %v466, %v454
    %v707 = vpack.c.b16 %v467, %v455
    %v708 = vpack.c.b16 %v468, %v456
    %v709 = vpack.c.b16 %v469, %v457
    %v710 = vpack.c.b16 %v470, %v458
    %v711 = vpack.c.b16 %v471, %v459
    %v712 = vpack.c.b16 %v484, %v472
    %v713 = vpack.c.b16 %v485, %v473
    %v714 = vpack.c.b16 %v486, %v474
    %v715 = vpack.c.b16 %v487, %v475
    %v716 = vpack.c.b16 %v488, %v476
    %v717 = vpack.c.b16 %v489, %v477
    %v718 = vpack.c.b16 %v490, %v478
    %v719 = vpack.c.b16 %v491, %v479
    %v720 = vpack.c.b16 %v492, %v480
    %v721 = vpack.c.b16 %v493, %v481
    %v722 = vpack.c.b16 %v494, %v482
    %v723 = vpack.c.b16 %v495, %v483
    %v724 = vpack.c.b16 %v508, %v496
    %v725 = vpack.c.b16 %v509, %v497
    %v726 = vpack.c.b16 %v510, %v498
    %v727 = vpack.c.b16 %v511, %v499
    %v728 = vpack.c.b16 %v512, %v500
    %v729 = vpack.c.b16 %v513, %v501
    %v730 = vpack.c.b16 %v514, %v502
    %v731 = vpack.c.b16 %v515, %v503
    %v732 = vpack.c.b16 %v516, %v504
    %v733 = vpack.c.b16 %v517, %v505
    %v734 = vpack.c.b16 %v518, %v506
    %v735 = vpack.c.b16 %v519, %v507
    %v736 = vpack.c.b16 %v532, %v520
    %v737 = vpack.c.b16 %v533, %v521
    %v738 = vpack.c.b16 %v534, %v522
    %v739 = vpack.c.b16 %v535, %v523
    %v740 = vpack.c.b16 %v536, %v524
    %v741 = vpack.c.b16 %v537, %v525
    %v742 = vpack.c.b16 %v538, %v526
    %v743 = vpack.c.b16 %v539, %v527
    %v744 = vpack.c.b16 %v540, %v528
    %v745 = vpack.c.b16 %v541, %v529
    %v746 = vpack.c.b16 %v542, %v530
    %v747 = vpack.c.b16 %v543, %v531
    %v748 = vpack.c.b16 %v556, %v544
    %v749 = vpack.c.b16 %v557, %v545
    %v750 = vpack.c.b16 %v558, %v546
    %v751 = vpack.c.b16 %v559, %v547
    %v752 = vpack.c.b16 %v560, %v548
    %v753 = vpack.c.b16 %v561, %v549
    %v754 = vpack.c.b16 %v562, %v550
    %v755 = vpack.c.b16 %v563, %v551
    %v756 = vpack.c.b16 %v564, %v552
    %v757 = vpack.c.b16 %v565, %v553
    %v758 = vpack.c.b16 %v566, %v554
    %v759 = vpack.c.b16 %v567, %v555
    %v760 = vpack.c.b16 %v580, %v568
    %v761 = vpack.c.b16 %v581, %v569
    %v762 = vpack.c.b16 %v582, %v570
    %v763 = vpack.c.b16 %v583, %v571
    %v764 = vpack.c.b16 %v584, %v572
    %v765 = vpack.c.b16 %v585, %v573
    %v766 = vpack.c.b16 %v586, %v574
    %v767 = vpack.c.b16 %v587, %v575
    %v768 = vpack.c.b16 %v588, %v576
    %v769 = vpack.c.b16 %v589, %v577
    %v770 = vpack.c.b16 %v590, %v578
    %v771 = vpack.c.b16 %v591, %v579
    %v772 = vpack.c.b16 %v604, %v592
    %v773 = vpack.c.b16 %v605, %v593
    %v774 = vpack.c.b16 %v606, %v594
    %v775 = vpack.c.b16 %v607, %v595
    %v776 = vpack.c.b16 %v608, %v596
    %v777 = vpack.c.b16 %v609, %v597
    %v778 = vpack.c.b16 %v610, %v598
    %v779 = vpack.c.b16 %v611, %v599
    %v780 = vpack.c.b16 %v612, %v600
    %v781 = vpack.c.b16 %v613, %v601
    %v782 = vpack.c.b16 %v614, %v602
    %v783 = vpack.c.b16 %v615, %v603
    %v784 = vpack.c.b16 %v628, %v616
    %v785 = vpack.c.b16 %v629, %v617
    %v786 = vpack.c.b16 %v630, %v618
    %v787 = vpack.c.b16 %v631, %v619
    %v788 = vpack.c.b16 %v632, %v620
    %v789 = vpack.c.b16 %v633, %v621
    %v790 = vpack.c.b16 %v634, %v622
    %v791 = vpack.c.b16 %v635, %v623
    %v792 = vpack.c.b16 %v636, %v624
    %v793 = vpack.c.b16 %v637, %v625
    %v794 = vpack.c.b16 %v638, %v626
    %v795 = vpack.c.b16 %v639, %v627
    %v796 = vpack.c.b16 %v652, %v640
    %v797 = vpack.c.b16 %v653, %v641
    %v798 = vpack.c.b16 %v654, %v642
    %v799 = vpack.c.b16 %v655, %v643
    %v800 = vpack.c.b16 %v656, %v644
    %v801 = vpack.c.b16 %v657, %v645
    %v802 = vpack.c.b16 %v658, %v646
    %v803 = vpack.c.b16 %v659, %v647
    %v804 = vpack.c.b16 %v660, %v648
    %v805 = vpack.c.b16 %v661, %v649
    %v806 = vpack.c.b16 %v662, %v650
    %v807 = vpack.c.b16 %v663, %v651
    %vm952 = vcmask 523264
    %v954 = vsel %vm952, %v230, 0
    %956 = vmatprep.subr.bf16.mxu0 %v665
    %957 = vmatpush1.bf16.msra.mxu0 %v664
    %958 = vmatprep.subr.bf16.mxu0 %v677
    %959 = vmatpush1.bf16.msra.mxu0 %v676
    %960 = vmatprep.subr.bf16.mxu0 %v689
    %961 = vmatpush1.bf16.msra.mxu0 %v688
    %962 = vmatprep.subr.bf16.mxu0 %v701
    %963 = vmatpush1.bf16.msra.mxu0 %v700
    %964 = vmatprep.subr.bf16.mxu0 %v713
    %965 = vmatpush1.bf16.msra.mxu0 %v712
    %966 = vmatprep.subr.bf16.mxu0 %v725
    %967 = vmatpush1.bf16.msra.mxu0 %v724
    %968 = vmatprep.subr.bf16.mxu0 %v737
    %969 = vmatpush1.bf16.msra.mxu0 %v736
    %970 = vmatprep.subr.bf16.mxu0 %v749
    %971 = vmatpush1.bf16.msra.mxu0 %v748
    %972 = vmatprep.subr.bf16.mxu0 %v761
    %973 = vmatpush1.bf16.msra.mxu0 %v760
    %974 = vmatprep.subr.bf16.mxu0 %v773
    %975 = vmatpush1.bf16.msra.mxu0 %v772
    %976 = vmatprep.subr.bf16.mxu0 %v785
    %977 = vmatpush1.bf16.msra.mxu0 %v784
    %978 = vmatprep.subr.bf16.mxu0 %v797
    %979 = vmatpush1.bf16.msra.mxu0 %v796
    %980 = vmatprep.subr.bf16.mxu0 0
    %981 = vmatpush1.bf16.msra.mxu0 0
    %982 = vmatprep.subr.bf16.mxu0 0
    %983 = vmatpush1.bf16.msra.mxu0 0
    %984 = vmatprep.subr.bf16.mxu0 0
    %985 = vmatpush1.bf16.msra.mxu0 0
    %986 = vmatprep.subr.bf16.mxu0 0
    %987 = vmatpush1.bf16.msra.mxu0 0
    %988 = vmatprep.mubr.bf16.mxu0 %v954
    %989 = vmatmul.mubr.bf16.gmra.mrb[0].mxu0 %v229
    %v990 = vpop.f32.mrb[0].mxu0
    %v991 = vadd.f32 0.0, %v990
    %v992 = vpop.f32.mrb[0].mxu0
    %v993 = vadd.f32 0.0, %v992
    %v994 = vpop.f32.mrb[0].mxu0
    %v995 = vpop.f32.mrb[0].mxu0
    %996 = vdwg.mxu0
    %997 = vmatprep.subr.bf16.mxu0 %v667
    %998 = vmatpush1.bf16.msra.mxu0 %v666
    %999 = vmatprep.subr.bf16.mxu0 %v679
    %1000 = vmatpush1.bf16.msra.mxu0 %v678
    %1001 = vmatprep.subr.bf16.mxu0 %v691
    %1002 = vmatpush1.bf16.msra.mxu0 %v690
    %1003 = vmatprep.subr.bf16.mxu0 %v703
    %1004 = vmatpush1.bf16.msra.mxu0 %v702
    %1005 = vmatprep.subr.bf16.mxu0 %v715
    %1006 = vmatpush1.bf16.msra.mxu0 %v714
    %1007 = vmatprep.subr.bf16.mxu0 %v727
    %1008 = vmatpush1.bf16.msra.mxu0 %v726
    %1009 = vmatprep.subr.bf16.mxu0 %v739
    %1010 = vmatpush1.bf16.msra.mxu0 %v738
    %1011 = vmatprep.subr.bf16.mxu0 %v751
    %1012 = vmatpush1.bf16.msra.mxu0 %v750
    %1013 = vmatprep.subr.bf16.mxu0 %v763
    %1014 = vmatpush1.bf16.msra.mxu0 %v762
    %1015 = vmatprep.subr.bf16.mxu0 %v775
    %1016 = vmatpush1.bf16.msra.mxu0 %v774
    %1017 = vmatprep.subr.bf16.mxu0 %v787
    %1018 = vmatpush1.bf16.msra.mxu0 %v786
    %1019 = vmatprep.subr.bf16.mxu0 %v799
    %1020 = vmatpush1.bf16.msra.mxu0 %v798
    %1021 = vmatprep.subr.bf16.mxu0 0
    %1022 = vmatpush1.bf16.msra.mxu0 0
    %1023 = vmatprep.subr.bf16.mxu0 0
    %1024 = vmatpush1.bf16.msra.mxu0 0
    %1025 = vmatprep.subr.bf16.mxu0 0
    %1026 = vmatpush1.bf16.msra.mxu0 0
    %1027 = vmatprep.subr.bf16.mxu0 0
    %1028 = vmatpush1.bf16.msra.mxu0 0
    %1029 = vmatprep.mubr.bf16.mxu0 %v954
    %1030 = vmatmul.mubr.bf16.gmra.mrb[0].mxu0 %v229
    %v1031 = vpop.f32.mrb[0].mxu0
    %v1032 = vadd.f32 0.0, %v1031
    %v1033 = vpop.f32.mrb[0].mxu0
    %v1034 = vadd.f32 0.0, %v1033
    %v1035 = vpop.f32.mrb[0].mxu0
    %v1036 = vpop.f32.mrb[0].mxu0
    %1037 = vdwg.mxu0
    %1038 = vmatprep.subr.bf16.mxu0 %v669
    %1039 = vmatpush1.bf16.msra.mxu0 %v668
    %1040 = vmatprep.subr.bf16.mxu0 %v681
    %1041 = vmatpush1.bf16.msra.mxu0 %v680
    %1042 = vmatprep.subr.bf16.mxu0 %v693
    %1043 = vmatpush1.bf16.msra.mxu0 %v692
    %1044 = vmatprep.subr.bf16.mxu0 %v705
    %1045 = vmatpush1.bf16.msra.mxu0 %v704
    %1046 = vmatprep.subr.bf16.mxu0 %v717
    %1047 = vmatpush1.bf16.msra.mxu0 %v716
    %1048 = vmatprep.subr.bf16.mxu0 %v729
    %1049 = vmatpush1.bf16.msra.mxu0 %v728
    %1050 = vmatprep.subr.bf16.mxu0 %v741
    %1051 = vmatpush1.bf16.msra.mxu0 %v740
    %1052 = vmatprep.subr.bf16.mxu0 %v753
    %1053 = vmatpush1.bf16.msra.mxu0 %v752
    %1054 = vmatprep.subr.bf16.mxu0 %v765
    %1055 = vmatpush1.bf16.msra.mxu0 %v764
    %1056 = vmatprep.subr.bf16.mxu0 %v777
    %1057 = vmatpush1.bf16.msra.mxu0 %v776
    %1058 = vmatprep.subr.bf16.mxu0 %v789
    %1059 = vmatpush1.bf16.msra.mxu0 %v788
    %1060 = vmatprep.subr.bf16.mxu0 %v801
    %1061 = vmatpush1.bf16.msra.mxu0 %v800
    %1062 = vmatprep.subr.bf16.mxu0 0
    %1063 = vmatpush1.bf16.msra.mxu0 0
    %1064 = vmatprep.subr.bf16.mxu0 0
    %1065 = vmatpush1.bf16.msra.mxu0 0
    %1066 = vmatprep.subr.bf16.mxu0 0
    %1067 = vmatpush1.bf16.msra.mxu0 0
    %1068 = vmatprep.subr.bf16.mxu0 0
    %1069 = vmatpush1.bf16.msra.mxu0 0
    %1070 = vmatprep.mubr.bf16.mxu0 %v954
    %1071 = vmatmul.mubr.bf16.gmra.mrb[0].mxu0 %v229
    %v1072 = vpop.f32.mrb[0].mxu0
    %v1073 = vadd.f32 0.0, %v1072
    %v1074 = vpop.f32.mrb[0].mxu0
    %v1075 = vadd.f32 0.0, %v1074
    %v1076 = vpop.f32.mrb[0].mxu0
    %v1077 = vpop.f32.mrb[0].mxu0
    %1078 = vdwg.mxu0
    %1079 = vmatprep.subr.bf16.mxu0 %v671
    %1080 = vmatpush1.bf16.msra.mxu0 %v670
    %1081 = vmatprep.subr.bf16.mxu0 %v683
    %1082 = vmatpush1.bf16.msra.mxu0 %v682
    %1083 = vmatprep.subr.bf16.mxu0 %v695
    %1084 = vmatpush1.bf16.msra.mxu0 %v694
    %1085 = vmatprep.subr.bf16.mxu0 %v707
    %1086 = vmatpush1.bf16.msra.mxu0 %v706
    %1087 = vmatprep.subr.bf16.mxu0 %v719
    %1088 = vmatpush1.bf16.msra.mxu0 %v718
    %1089 = vmatprep.subr.bf16.mxu0 %v731
    %1090 = vmatpush1.bf16.msra.mxu0 %v730
    %1091 = vmatprep.subr.bf16.mxu0 %v743
    %1092 = vmatpush1.bf16.msra.mxu0 %v742
    %1093 = vmatprep.subr.bf16.mxu0 %v755
    %1094 = vmatpush1.bf16.msra.mxu0 %v754
    %1095 = vmatprep.subr.bf16.mxu0 %v767
    %1096 = vmatpush1.bf16.msra.mxu0 %v766
    %1097 = vmatprep.subr.bf16.mxu0 %v779
    %1098 = vmatpush1.bf16.msra.mxu0 %v778
    %1099 = vmatprep.subr.bf16.mxu0 %v791
    %1100 = vmatpush1.bf16.msra.mxu0 %v790
    %1101 = vmatprep.subr.bf16.mxu0 %v803
    %1102 = vmatpush1.bf16.msra.mxu0 %v802
    %1103 = vmatprep.subr.bf16.mxu0 0
    %1104 = vmatpush1.bf16.msra.mxu0 0
    %1105 = vmatprep.subr.bf16.mxu0 0
    %1106 = vmatpush1.bf16.msra.mxu0 0
    %1107 = vmatprep.subr.bf16.mxu0 0
    %1108 = vmatpush1.bf16.msra.mxu0 0
    %1109 = vmatprep.subr.bf16.mxu0 0
    %1110 = vmatpush1.bf16.msra.mxu0 0
    %1111 = vmatprep.mubr.bf16.mxu0 %v954
    %1112 = vmatmul.mubr.bf16.gmra.mrb[0].mxu0 %v229
    %v1113 = vpop.f32.mrb[0].mxu0
    %v1114 = vadd.f32 0.0, %v1113
    %v1115 = vpop.f32.mrb[0].mxu0
    %v1116 = vadd.f32 0.0, %v1115
    %v1117 = vpop.f32.mrb[0].mxu0
    %v1118 = vpop.f32.mrb[0].mxu0
    %1119 = vdwg.mxu0
    %1120 = vmatprep.subr.bf16.mxu0 %v673
    %1121 = vmatpush1.bf16.msra.mxu0 %v672
    %1122 = vmatprep.subr.bf16.mxu0 %v685
    %1123 = vmatpush1.bf16.msra.mxu0 %v684
    %1124 = vmatprep.subr.bf16.mxu0 %v697
    %1125 = vmatpush1.bf16.msra.mxu0 %v696
    %1126 = vmatprep.subr.bf16.mxu0 %v709
    %1127 = vmatpush1.bf16.msra.mxu0 %v708
    %1128 = vmatprep.subr.bf16.mxu0 %v721
    %1129 = vmatpush1.bf16.msra.mxu0 %v720
    %1130 = vmatprep.subr.bf16.mxu0 %v733
    %1131 = vmatpush1.bf16.msra.mxu0 %v732
    %1132 = vmatprep.subr.bf16.mxu0 %v745
    %1133 = vmatpush1.bf16.msra.mxu0 %v744
    %1134 = vmatprep.subr.bf16.mxu0 %v757
    %1135 = vmatpush1.bf16.msra.mxu0 %v756
    %1136 = vmatprep.subr.bf16.mxu0 %v769
    %1137 = vmatpush1.bf16.msra.mxu0 %v768
    %1138 = vmatprep.subr.bf16.mxu0 %v781
    %1139 = vmatpush1.bf16.msra.mxu0 %v780
    %1140 = vmatprep.subr.bf16.mxu0 %v793
    %1141 = vmatpush1.bf16.msra.mxu0 %v792
    %1142 = vmatprep.subr.bf16.mxu0 %v805
    %1143 = vmatpush1.bf16.msra.mxu0 %v804
    %1144 = vmatprep.subr.bf16.mxu0 0
    %1145 = vmatpush1.bf16.msra.mxu0 0
    %1146 = vmatprep.subr.bf16.mxu0 0
    %1147 = vmatpush1.bf16.msra.mxu0 0
    %1148 = vmatprep.subr.bf16.mxu0 0
    %1149 = vmatpush1.bf16.msra.mxu0 0
    %1150 = vmatprep.subr.bf16.mxu0 0
    %1151 = vmatpush1.bf16.msra.mxu0 0
    %1152 = vmatprep.mubr.bf16.mxu0 %v954
    %1153 = vmatmul.mubr.bf16.gmra.mrb[0].mxu0 %v229
    %v1154 = vpop.f32.mrb[0].mxu0
    %v1155 = vadd.f32 0.0, %v1154
    %v1156 = vpop.f32.mrb[0].mxu0
    %v1157 = vadd.f32 0.0, %v1156
    %v1158 = vpop.f32.mrb[0].mxu0
    %v1159 = vpop.f32.mrb[0].mxu0
    %1160 = vdwg.mxu0
    %1161 = vmatprep.subr.bf16.mxu0 %v675
    %1162 = vmatpush1.bf16.msra.mxu0 %v674
    %1163 = vmatprep.subr.bf16.mxu0 %v687
    %1164 = vmatpush1.bf16.msra.mxu0 %v686
    %1165 = vmatprep.subr.bf16.mxu0 %v699
    %1166 = vmatpush1.bf16.msra.mxu0 %v698
    %1167 = vmatprep.subr.bf16.mxu0 %v711
    %1168 = vmatpush1.bf16.msra.mxu0 %v710
    %1169 = vmatprep.subr.bf16.mxu0 %v723
    %1170 = vmatpush1.bf16.msra.mxu0 %v722
    %1171 = vmatprep.subr.bf16.mxu0 %v735
    %1172 = vmatpush1.bf16.msra.mxu0 %v734
    %1173 = vmatprep.subr.bf16.mxu0 %v747
    %1174 = vmatpush1.bf16.msra.mxu0 %v746
    %1175 = vmatprep.subr.bf16.mxu0 %v759
    %1176 = vmatpush1.bf16.msra.mxu0 %v758
    %1177 = vmatprep.subr.bf16.mxu0 %v771
    %1178 = vmatpush1.bf16.msra.mxu0 %v770
    %1179 = vmatprep.subr.bf16.mxu0 %v783
    %1180 = vmatpush1.bf16.msra.mxu0 %v782
    %1181 = vmatprep.subr.bf16.mxu0 %v795
    %1182 = vmatpush1.bf16.msra.mxu0 %v794
    %1183 = vmatprep.subr.bf16.mxu0 %v807
    %1184 = vmatpush1.bf16.msra.mxu0 %v806
    %1185 = vmatprep.subr.bf16.mxu0 0
    %1186 = vmatpush1.bf16.msra.mxu0 0
    %1187 = vmatprep.subr.bf16.mxu0 0
    %1188 = vmatpush1.bf16.msra.mxu0 0
    %1189 = vmatprep.subr.bf16.mxu0 0
    %1190 = vmatpush1.bf16.msra.mxu0 0
    %1191 = vmatprep.subr.bf16.mxu0 0
    %1192 = vmatpush1.bf16.msra.mxu0 0
    %1193 = vmatprep.mubr.bf16.mxu0 %v954
    %1194 = vmatmul.mubr.bf16.gmra.mrb[0].mxu0 %v229
    %v1195 = vpop.f32.mrb[0].mxu0
    %v1196 = vadd.f32 0.0, %v1195
    %v1197 = vpop.f32.mrb[0].mxu0
    %v1198 = vadd.f32 0.0, %v1197
    %v1199 = vpop.f32.mrb[0].mxu0
    %v1200 = vpop.f32.mrb[0].mxu0
    %1201 = vdwg.mxu0
    %v1202 = vmax.f32 %v991, %v1034
    %v1203 = vmax.f32 %v993, %v1073
    %v1204 = vmax.f32 %v1032, %v1075
    %v1205 = vmax.f32 %v1114, %v1157
    %v1206 = vmax.f32 %v1116, %v1196
    %v1207 = vmax.f32 %v1155, %v1198
    %v1208 = vmax.f32 %v1202, %v1205
    %v1209 = vmax.f32 %v1203, %v1206
    %v1210 = vmax.f32 %v1204, %v1207
    %v1211 = vld [vmem:[%s2] sm:$0x7]
    %v1213 = vlaneseq
    %v1214 = vshrl.u32 %v1213, 7
    %v1215 = vsub.s32 0, %v1214
    %v1216 = vrot.slane %v1211, %v1215
    %v1217 = vlaneseq
    %v1218 = vshrl.u32 %v1217, 7
    %v1219 = vsub.s32 1, %v1218
    %v1220 = vrot.slane %v1211, %v1219
    %v1221 = vlaneseq
    %v1222 = vshrl.u32 %v1221, 7
    %v1223 = vsub.s32 2, %v1222
    %v1224 = vrot.slane %v1211, %v1223
    %v1228 = vadd.f32 %v1208, %v1216
    %v1229 = vadd.f32 %v1209, %v1220
    %v1230 = vadd.f32 %v1210, %v1224
    %v1231 = vmax.f32 %v1228, 0.0
    %v1232 = vmax.f32 %v1229, 0.0
    %v1233 = vmax.f32 %v1230, 0.0
    %v1234 = vld [vmem:[#allocation7] sm:$0xff]
    %v1235 = vld [vmem:[#allocation7 + $0x8] sm:$0xff]
    %v1236 = vld [vmem:[#allocation7 + $0x10] sm:$0xff]
    %v1237 = vld [vmem:[#allocation7 + $0x18] sm:$0xff]
    %v1238 = vld [vmem:[#allocation7 + $0x20] sm:$0xff]
    %v1239 = vld [vmem:[#allocation7 + $0x28] sm:$0xff]
    %v1240 = vld [vmem:[#allocation7 + $0x30] sm:$0xff]
    %v1241 = vld [vmem:[#allocation7 + $0x38] sm:$0xff]
    %v1242 = vld [vmem:[#allocation7 + $0x40] sm:$0xff]
    %v1243 = vld [vmem:[#allocation7 + $0x48] sm:$0xff]
    %v1244 = vld [vmem:[#allocation7 + $0x50] sm:$0xff]
    %v1245 = vld [vmem:[#allocation7 + $0x58] sm:$0xff]
    %v1246 = vld [vmem:[#allocation7 + $0x60] sm:$0xff]
    %v1247 = vld [vmem:[#allocation7 + $0x68] sm:$0xff]
    %v1248 = vld [vmem:[#allocation7 + $0x70] sm:$0xff]
    %v1249 = vld [vmem:[#allocation7 + $0x78] sm:$0xff]
    %v1250 = vld [vmem:[#allocation7 + $0x80] sm:$0xff]
    %v1251 = vld [vmem:[#allocation7 + $0x88] sm:$0xff]
    %v1252 = vld [vmem:[#allocation7 + $0x90] sm:$0xff]
    %v1253 = vld [vmem:[#allocation7 + $0x98] sm:$0xff]
    %v1254 = vld [vmem:[#allocation7 + $0xa0] sm:$0xff]
    %v1255 = vld [vmem:[#allocation7 + $0xa8] sm:$0xff]
    %v1256 = vld [vmem:[#allocation7 + $0xb0] sm:$0xff]
    %v1257 = vld [vmem:[#allocation7 + $0xb8] sm:$0xff]
    %v1258 = vld [vmem:[#allocation7 + $0xc0] sm:$0xff]
    %v1259 = vld [vmem:[#allocation7 + $0xc8] sm:$0xff]
    %v1260 = vld [vmem:[#allocation7 + $0xd0] sm:$0xff]
    %v1261 = vld [vmem:[#allocation7 + $0xd8] sm:$0xff]
    %v1262 = vld [vmem:[#allocation7 + $0xe0] sm:$0xff]
    %v1263 = vld [vmem:[#allocation7 + $0xe8] sm:$0xff]
    %v1264 = vld [vmem:[#allocation7 + $0xf0] sm:$0xff]
    %v1265 = vld [vmem:[#allocation7 + $0xf8] sm:$0xff]
    %v1266 = vld [vmem:[#allocation7 + $0x100] sm:$0xff]
    %v1267 = vld [vmem:[#allocation7 + $0x108] sm:$0xff]
    %v1268 = vld [vmem:[#allocation7 + $0x110] sm:$0xff]
    %v1269 = vld [vmem:[#allocation7 + $0x118] sm:$0xff]
    %v1270 = vld [vmem:[#allocation7 + $0x120] sm:$0xff]
    %v1271 = vld [vmem:[#allocation7 + $0x128] sm:$0xff]
    %v1272 = vld [vmem:[#allocation7 + $0x130] sm:$0xff]
    %v1273 = vld [vmem:[#allocation7 + $0x138] sm:$0xff]
    %v1274 = vld [vmem:[#allocation7 + $0x140] sm:$0xff]
    %v1275 = vld [vmem:[#allocation7 + $0x148] sm:$0xff]
    %v1276 = vld [vmem:[#allocation7 + $0x150] sm:$0xff]
    %v1277 = vld [vmem:[#allocation7 + $0x158] sm:$0xff]
    %v1278 = vld [vmem:[#allocation7 + $0x160] sm:$0xff]
    %v1279 = vld [vmem:[#allocation7 + $0x168] sm:$0xff]
    %v1280 = vld [vmem:[#allocation7 + $0x170] sm:$0xff]
    %v1281 = vld [vmem:[#allocation7 + $0x178] sm:$0xff]
    %v1282 = vld [vmem:[%s4] sm:$0x1]
    %v1284 = vlaneseq
    %v1285 = vshrl.u32 %v1284, 7
    %v1286 = vsub.s32 0, %v1285
    %v1287 = vrot.slane %v1282, %v1286
    %1289 = vmatprep.subr.mxu0 0.0
    %1290 = vmatpush1.msra.mxu0 %v1234
    %1291 = vmatprep.subr.mxu0 0.0
    %1292 = vmatpush1.msra.mxu0 %v1235
    %1293 = vmatprep.subr.mxu0 0.0
    %1294 = vmatpush1.msra.mxu0 %v1236
    %1295 = vmatprep.subr.mxu0 0.0
    %1296 = vmatpush1.msra.mxu0 %v1237
    %1297 = vmatprep.subr.mxu0 0.0
    %1298 = vmatpush1.msra.mxu0 %v1238
    %1299 = vmatprep.subr.mxu0 0.0
    %1300 = vmatpush1.msra.mxu0 %v1239
    %1301 = vmatprep.subr.mxu0 0.0
    %1302 = vmatpush1.msra.mxu0 %v1240
    %1303 = vmatprep.subr.mxu0 0.0
    %1304 = vmatpush1.msra.mxu0 %v1241
    %1305 = vmatprep.subr.mxu0 0.0
    %1306 = vmatpush1.msra.mxu0 %v1242
    %1307 = vmatprep.subr.mxu0 0.0
    %1308 = vmatpush1.msra.mxu0 %v1243
    %1309 = vmatprep.subr.mxu0 0.0
    %1310 = vmatpush1.msra.mxu0 %v1244
    %1311 = vmatprep.subr.mxu0 0.0
    %1312 = vmatpush1.msra.mxu0 %v1245
    %1313 = vmatprep.subr.mxu0 0.0
    %1314 = vmatpush1.msra.mxu0 %v1246
    %1315 = vmatprep.subr.mxu0 0.0
    %1316 = vmatpush1.msra.mxu0 %v1247
    %1317 = vmatprep.subr.mxu0 0.0
    %1318 = vmatpush1.msra.mxu0 %v1248
    %1319 = vmatprep.subr.mxu0 0.0
    %1320 = vmatpush1.msra.mxu0 %v1249
    %1321 = vmatprep.subr.mxu0 0.0
    %1322 = vmatpush1.msra.mxu0 %v1250
    %1323 = vmatprep.subr.mxu0 0.0
    %1324 = vmatpush1.msra.mxu0 %v1251
    %1325 = vmatprep.subr.mxu0 0.0
    %1326 = vmatpush1.msra.mxu0 %v1252
    %1327 = vmatprep.subr.mxu0 0.0
    %1328 = vmatpush1.msra.mxu0 %v1253
    %1329 = vmatprep.subr.mxu0 0.0
    %1330 = vmatpush1.msra.mxu0 %v1254
    %1331 = vmatprep.subr.mxu0 0.0
    %1332 = vmatpush1.msra.mxu0 %v1255
    %1333 = vmatprep.subr.mxu0 0.0
    %1334 = vmatpush1.msra.mxu0 %v1256
    %1335 = vmatprep.subr.mxu0 0.0
    %1336 = vmatpush1.msra.mxu0 %v1257
    %1337 = vmatprep.subr.mxu0 0.0
    %1338 = vmatpush1.msra.mxu0 %v1258
    %1339 = vmatprep.subr.mxu0 0.0
    %1340 = vmatpush1.msra.mxu0 %v1259
    %1341 = vmatprep.subr.mxu0 0.0
    %1342 = vmatpush1.msra.mxu0 %v1260
    %1343 = vmatprep.subr.mxu0 0.0
    %1344 = vmatpush1.msra.mxu0 %v1261
    %1345 = vmatprep.subr.mxu0 0.0
    %1346 = vmatpush1.msra.mxu0 %v1262
    %1347 = vmatprep.subr.mxu0 0.0
    %1348 = vmatpush1.msra.mxu0 %v1263
    %1349 = vmatprep.subr.mxu0 0.0
    %1350 = vmatpush1.msra.mxu0 %v1264
    %1351 = vmatprep.subr.mxu0 0.0
    %1352 = vmatpush1.msra.mxu0 %v1265
    %1353 = vmatprep.mubr.f32.mxu0 %v1232
    %1354 = vmatmul.mubr.f32.gmra.mrb[0].mxu0 %v1231
    %v1355 = vpop.f32.mrb[0].mxu0
    %v1356 = vadd.f32 %v1287, %v1355
    %v1357 = vpop.f32.mrb[0].mxu0
    %1358 = vdwg.mxu0
    %1359 = vmatprep.subr.mxu0 0.0
    %1360 = vmatpush1.msra.mxu0 %v1266
    %1361 = vmatprep.subr.mxu0 0.0
    %1362 = vmatpush1.msra.mxu0 %v1267
    %1363 = vmatprep.subr.mxu0 0.0
    %1364 = vmatpush1.msra.mxu0 %v1268
    %1365 = vmatprep.subr.mxu0 0.0
    %1366 = vmatpush1.msra.mxu0 %v1269
    %1367 = vmatprep.subr.mxu0 0.0
    %1368 = vmatpush1.msra.mxu0 %v1270
    %1369 = vmatprep.subr.mxu0 0.0
    %1370 = vmatpush1.msra.mxu0 %v1271
    %1371 = vmatprep.subr.mxu0 0.0
    %1372 = vmatpush1.msra.mxu0 %v1272
    %1373 = vmatprep.subr.mxu0 0.0
    %1374 = vmatpush1.msra.mxu0 %v1273
    %1375 = vmatprep.subr.mxu0 0.0
    %1376 = vmatpush1.msra.mxu0 %v1274
    %1377 = vmatprep.subr.mxu0 0.0
    %1378 = vmatpush1.msra.mxu0 %v1275
    %1379 = vmatprep.subr.mxu0 0.0
    %1380 = vmatpush1.msra.mxu0 %v1276
    %1381 = vmatprep.subr.mxu0 0.0
    %1382 = vmatpush1.msra.mxu0 %v1277
    %1383 = vmatprep.subr.mxu0 0.0
    %1384 = vmatpush1.msra.mxu0 %v1278
    %1385 = vmatprep.subr.mxu0 0.0
    %1386 = vmatpush1.msra.mxu0 %v1279
    %1387 = vmatprep.subr.mxu0 0.0
    %1388 = vmatpush1.msra.mxu0 %v1280
    %1389 = vmatprep.subr.mxu0 0.0
    %1390 = vmatpush1.msra.mxu0 %v1281
    %1391 = vmatprep.subr.mxu0 0.0
    %1392 = vmatpush1.msra.mxu0 0.0
    %1393 = vmatprep.subr.mxu0 0.0
    %1394 = vmatpush1.msra.mxu0 0.0
    %1395 = vmatprep.subr.mxu0 0.0
    %1396 = vmatpush1.msra.mxu0 0.0
    %1397 = vmatprep.subr.mxu0 0.0
    %1398 = vmatpush1.msra.mxu0 0.0
    %1399 = vmatprep.subr.mxu0 0.0
    %1400 = vmatpush1.msra.mxu0 0.0
    %1401 = vmatprep.subr.mxu0 0.0
    %1402 = vmatpush1.msra.mxu0 0.0
    %1403 = vmatprep.subr.mxu0 0.0
    %1404 = vmatpush1.msra.mxu0 0.0
    %1405 = vmatprep.subr.mxu0 0.0
    %1406 = vmatpush1.msra.mxu0 0.0
    %1407 = vmatprep.subr.mxu0 0.0
    %1408 = vmatpush1.msra.mxu0 0.0
    %1409 = vmatprep.subr.mxu0 0.0
    %1410 = vmatpush1.msra.mxu0 0.0
    %1411 = vmatprep.subr.mxu0 0.0
    %1412 = vmatpush1.msra.mxu0 0.0
    %1413 = vmatprep.subr.mxu0 0.0
    %1414 = vmatpush1.msra.mxu0 0.0
    %1415 = vmatprep.subr.mxu0 0.0
    %1416 = vmatpush1.msra.mxu0 0.0
    %1417 = vmatprep.subr.mxu0 0.0
    %1418 = vmatpush1.msra.mxu0 0.0
    %1419 = vmatprep.subr.mxu0 0.0
    %1420 = vmatpush1.msra.mxu0 0.0
    %1421 = vmatprep.subr.mxu0 0.0
    %1422 = vmatpush1.msra.mxu0 0.0
    %1423 = vmatprep.mubr.f32.mxu0 0.0
    %1424 = vmatmul.mubr.f32.gmra.mrb[0].mxu0 %v1233
    %v1425 = vpop.f32.mrb[0].mxu0
    %v1426 = vadd.f32 %v1356, %v1425
    %v1427 = vpop.f32.mrb[0].mxu0
    %1428 = vdwg.mxu0
    %v1429 = vmax.f32 %v1426, 0.0
    %v1430 = vld [vmem:[#allocation8] sm:$0xff]
    %v1431 = vld [vmem:[#allocation8 + $0x8] sm:$0xff]
    %v1432 = vld [vmem:[#allocation8 + $0x10] sm:$0xff]
    %v1433 = vld [vmem:[#allocation8 + $0x18] sm:$0xff]
    %v1434 = vld [vmem:[#allocation8 + $0x20] sm:$0xff]
    %v1435 = vld [vmem:[#allocation8 + $0x28] sm:$0xff]
    %v1436 = vld [vmem:[#allocation8 + $0x30] sm:$0xff]
    %v1437 = vld [vmem:[#allocation8 + $0x38] sm:$0xff]
    %v1438 = vld [vmem:[#allocation8 + $0x40] sm:$0xff]
    %v1439 = vld [vmem:[#allocation8 + $0x48] sm:$0xff]
    %v1440 = vld [vmem:[#allocation8 + $0x50] sm:$0xff]
    %v1441 = vld [vmem:[#allocation8 + $0x58] sm:$0xff]
    %v1442 = vld [vmem:[#allocation8 + $0x60] sm:$0xff]
    %v1443 = vld [vmem:[#allocation8 + $0x68] sm:$0xff]
    %v1444 = vld [vmem:[#allocation8 + $0x70] sm:$0xff]
    %v1445 = vld [vmem:[#allocation8 + $0x78] sm:$0xff]
    %v1446 = vld [vmem:[%s6] sm:$0x1]
    %v1448 = vlaneseq
    %v1449 = vshrl.u32 %v1448, 7
    %v1450 = vsub.s32 0, %v1449
    %v1451 = vrot.slane %v1446, %v1450
    %1453 = vmatprep.subr.mxu0 0.0
    %1454 = vmatpush1.msra.mxu0 %v1430
    %1455 = vmatprep.subr.mxu0 0.0
    %1456 = vmatpush1.msra.mxu0 %v1431
    %1457 = vmatprep.subr.mxu0 0.0
    %1458 = vmatpush1.msra.mxu0 %v1432
    %1459 = vmatprep.subr.mxu0 0.0
    %1460 = vmatpush1.msra.mxu0 %v1433
    %1461 = vmatprep.subr.mxu0 0.0
    %1462 = vmatpush1.msra.mxu0 %v1434
    %1463 = vmatprep.subr.mxu0 0.0
    %1464 = vmatpush1.msra.mxu0 %v1435
    %1465 = vmatprep.subr.mxu0 0.0
    %1466 = vmatpush1.msra.mxu0 %v1436
    %1467 = vmatprep.subr.mxu0 0.0
    %1468 = vmatpush1.msra.mxu0 %v1437
    %1469 = vmatprep.subr.mxu0 0.0
    %1470 = vmatpush1.msra.mxu0 %v1438
    %1471 = vmatprep.subr.mxu0 0.0
    %1472 = vmatpush1.msra.mxu0 %v1439
    %1473 = vmatprep.subr.mxu0 0.0
    %1474 = vmatpush1.msra.mxu0 %v1440
    %1475 = vmatprep.subr.mxu0 0.0
    %1476 = vmatpush1.msra.mxu0 %v1441
    %1477 = vmatprep.subr.mxu0 0.0
    %1478 = vmatpush1.msra.mxu0 %v1442
    %1479 = vmatprep.subr.mxu0 0.0
    %1480 = vmatpush1.msra.mxu0 %v1443
    %1481 = vmatprep.subr.mxu0 0.0
    %1482 = vmatpush1.msra.mxu0 %v1444
    %1483 = vmatprep.subr.mxu0 0.0
    %1484 = vmatpush1.msra.mxu0 %v1445
    %1485 = vmatprep.subr.mxu0 0.0
    %1486 = vmatpush1.msra.mxu0 0.0
    %1487 = vmatprep.subr.mxu0 0.0
    %1488 = vmatpush1.msra.mxu0 0.0
    %1489 = vmatprep.subr.mxu0 0.0
    %1490 = vmatpush1.msra.mxu0 0.0
    %1491 = vmatprep.subr.mxu0 0.0
    %1492 = vmatpush1.msra.mxu0 0.0
    %1493 = vmatprep.subr.mxu0 0.0
    %1494 = vmatpush1.msra.mxu0 0.0
    %1495 = vmatprep.subr.mxu0 0.0
    %1496 = vmatpush1.msra.mxu0 0.0
    %1497 = vmatprep.subr.mxu0 0.0
    %1498 = vmatpush1.msra.mxu0 0.0
    %1499 = vmatprep.subr.mxu0 0.0
    %1500 = vmatpush1.msra.mxu0 0.0
    %1501 = vmatprep.subr.mxu0 0.0
    %1502 = vmatpush1.msra.mxu0 0.0
    %1503 = vmatprep.subr.mxu0 0.0
    %1504 = vmatpush1.msra.mxu0 0.0
    %1505 = vmatprep.subr.mxu0 0.0
    %1506 = vmatpush1.msra.mxu0 0.0
    %1507 = vmatprep.subr.mxu0 0.0
    %1508 = vmatpush1.msra.mxu0 0.0
    %1509 = vmatprep.subr.mxu0 0.0
    %1510 = vmatpush1.msra.mxu0 0.0
    %1511 = vmatprep.subr.mxu0 0.0
    %1512 = vmatpush1.msra.mxu0 0.0
    %1513 = vmatprep.subr.mxu0 0.0
    %1514 = vmatpush1.msra.mxu0 0.0
    %1515 = vmatprep.subr.mxu0 0.0
    %1516 = vmatpush1.msra.mxu0 0.0
    %1517 = vmatprep.mubr.f32.mxu0 0.0
    %1518 = vmatmul.mubr.f32.gmra.mrb[0].mxu0 %v1429
    %v1519 = vpop.f32.mrb[0].mxu0
    %v1520 = vadd.f32 %v1451, %v1519
    %v1521 = vpop.f32.mrb[0].mxu0
    %1522 = vdwg.mxu0
    %1523 = vst [vmem:[#allocation10] sm:$0xff] %v1520
    // Predicated region
    $region46: #{tpu_custom_call.1} parent=1 // pred_check
      _
    $region47: #{tpu_custom_call.1} parent=1 // pred_check_branch
      %1525 = sbr.rel (0) target = $region49
    $region48: #{tpu_custom_call.1} parent=1 // pred_region
      %s1527 = ssub.s32 128, 128
      %1528 = vsyncadd [#allocation4], %s1527
      %s1530 = sshll.u32 [#allocation10], 4
      %s1531 = int_to_ptr.vmem [resolvable:$true] %s1530
      %1533 = dma.vmem_to_hbm [thread:$0]  %s1531, 128, %s7, [#allocation4]
    $region49: #{tpu_custom_call.1} parent=1 // pred_fallthru
      _
    // Predicated region
    $region50: #{tpu_custom_call.1} parent=1 // pred_check
      _
    $region51: #{tpu_custom_call.1} parent=1 // pred_check_branch
      %1535 = sbr.rel (0) target = $region53
    $region52: #{tpu_custom_call.1} parent=1 // pred_region
      %1536 = dma.done [#allocation4], 128
    $region53: #{tpu_custom_call.1} parent=1 // pred_fallthru
      _
    %1537 = vsyncpa [#allocation3], 1
    %1538 = vsyncpa [#allocation6], 1
    %1539 = vsyncpa [#allocation9], 1
    %1540 = vsyncpa [#allocation4], 1

</llo_original>
